<compile_context>
chip_gen: v5e
topology: v5e:2x2
jax: 0.10.0
libtpu: 0.0.40
codegen_flags: <defaults>
</compile_context>

<pallas_src>
import functools

import jax
import jax.numpy as jnp
from jax import lax
from jax.experimental import pallas as pl
from jax.experimental.pallas import tpu as pltpu

_LANE = 128
_ROW_ALIGN = 32     # small-input row alignment: native sublane tile for f32/bf16/int8
_CHUNK_ROWS = 512   # rows per inner compute chunk (256 KiB per f32 operand)


def _round_up(x, m):
    return (x + m - 1) // m * m


def _device_flags():
    try:
        kind = jax.devices()[0].device_kind.lower()
    except Exception:
        kind = ""
    is_v7 = ("v7" in kind) or ("7x" in kind)
    is_v5e = ("v5e" in kind) or ("v5 lite" in kind) or ("v5lite" in kind)
    return is_v7, is_v5e


_IS_V7, _IS_V5E = _device_flags()
# Rows per grid step for large inputs.  8192 rows => ~18 MiB double-buffered f32 window
# footprint (fits v6e/v7x scoped VMEM); 4096 on v5e (16 MiB scoped default).
_TARGET_TM = 4096 if _IS_V5E else 8192
# Only v7x has 2 TensorCores/chip; on 1-TC chips the parallel split only adds a clamped
# duplicate block and an index_map minimum, so disable it there.
_N_PAR_MAX = 2 if _IS_V7 else 1


@functools.cache
def _bool_refs_supported() -> bool:
    """Probe whether this backend accepts bool-typed Pallas input refs.

    If yes, the bool mask is passed through with zero conversion traffic; if not,
    we fall back to a single bool->int8 cast in the wrapper.
    """
    def probe(m_ref, o_ref):
        o_ref[...] = m_ref[...].astype(jnp.float32)

    try:
        out = pl.pallas_call(
            probe, out_shape=jax.ShapeDtypeStruct((8, _LANE), jnp.float32)
        )(jnp.zeros((8, _LANE), jnp.bool_))
        jax.block_until_ready(out)
        return True
    except Exception:
        return False


# Resolve the probe once, eagerly, outside of any trace.
_BOOL_OK = _bool_refs_supported()


def _make_kernel(tm, chunk_rows, acc_rows, rows, steps_per_slice, has_tail):
    """Masked L1-in-log-space partial-reduction kernel (statics baked in)."""
    n_inner = tm // chunk_rows
    sub = chunk_rows // acc_rows

    def kernel(pred_ref, gt_ref, mask_ref, sum_ref, cnt_ref):
        # pred_ref/gt_ref: (tm, 128) native dtype; mask_ref: (tm, 128) bool/int8.
        # sum_ref/cnt_ref: (acc_rows, 128) f32, resident across the reduction axis.
        p = pl.program_id(0)
        i = pl.program_id(1)

        @pl.when(i == 0)
        def _init():
            sum_ref[...] = jnp.zeros_like(sum_ref)
            cnt_ref[...] = jnp.zeros_like(cnt_ref)

        # Logical start row of this block (may exceed `rows` for tail / clamped blocks).
        block_row0 = (p * steps_per_slice + i) * tm

        def accum_chunk(r0, use_bounds_mask):
            # Per-chunk loads keep live temporaries ~1 MiB even for 8192-row DMA windows.
            pred = pred_ref[pl.ds(r0, chunk_rows), :].astype(jnp.float32)
            gt = gt_ref[pl.ds(r0, chunk_rows), :].astype(jnp.float32)
            m_raw = mask_ref[pl.ds(r0, chunk_rows), :]
            m = m_raw if m_raw.dtype == jnp.bool_ else (m_raw != 0)
            if use_bounds_mask:
                row_ids = (block_row0 + r0
                           + lax.broadcasted_iota(jnp.int32, (chunk_rows, _LANE), 0))
                m = m & (row_ids < rows)
            diff = jnp.abs(jnp.log1p(pred) - jnp.log1p(gt))
            # Select (not multiply): kills NaNs from log1p of OOB-garbage rows.
            diff = jnp.where(m, diff, 0.0)
            mf = m.astype(jnp.float32)
            # Vreg-shaped accumulation: (sub, acc_rows, 128) leading-axis sum = 8
            # independent vreg add chains (pure VALU, no XLU), final reduce in wrapper.
            sum_ref[...] += diff.reshape(sub, acc_rows, _LANE).sum(axis=0)
            cnt_ref[...] += mf.reshape(sub, acc_rows, _LANE).sum(axis=0)

        def run_block(use_bounds_mask):
            def body(c, carry):
                r0 = pl.multiple_of(c * chunk_rows, chunk_rows)
                accum_chunk(r0, use_bounds_mask)
                return carry
            lax.fori_loop(0, n_inner, body, 0)

        if not has_tail:
            # Every block is fully in-bounds: skip the iota bounds mask entirely.
            run_block(False)
        else:
            is_full = block_row0 + tm <= rows

            @pl.when(is_full)
            def _full_block():
                run_block(False)

            @pl.when(jnp.logical_not(is_full))
            def _tail_block():
                run_block(True)

    return kernel


def _masked_l1_log_sums(pred2d, gt2d, mask2d):
    rows = pred2d.shape[0]

    if rows <= _TARGET_TM:
        tm = rows                    # single full-extent block (wrapper aligned rows to 32)
    else:
        tm = _TARGET_TM              # multiple of 32 -> legal tiling for f32/bf16/int8

    chunk_rows = next(c for c in (_CHUNK_ROWS, 256, 128, 64, 32, 16, 8, 4, 2, 1)
                      if tm % c == 0)
    acc_rows = min(64, chunk_rows)   # both powers of two -> acc_rows divides chunk_rows

    n_blocks = pl.cdiv(rows, tm)
    n_par = _N_PAR_MAX if n_blocks >= 2 else 1
    steps = pl.cdiv(n_blocks, n_par)
    needs_clamp = n_par * steps > n_blocks       # last slice may overshoot (v7x only)
    has_tail = (rows % tm != 0) or needs_clamp

    def data_map(p, i):
        b = p * steps + i
        if needs_clamp:
            # Duplicated (clamped) block is fully masked out in-kernel via row bounds.
            b = jnp.minimum(b, n_blocks - 1)
        return (b, 0)

    data_spec = pl.BlockSpec((tm, _LANE), data_map)
    acc_spec = pl.BlockSpec((None, acc_rows, _LANE), lambda p, i: (p, 0, 0))

    out_shape = (
        jax.ShapeDtypeStruct((n_par, acc_rows, _LANE), jnp.float32),
        jax.ShapeDtypeStruct((n_par, acc_rows, _LANE), jnp.float32),
    )

    kernel = _make_kernel(tm, chunk_rows, acc_rows, rows, steps, has_tail)

    bytes_per_elem = (pred2d.dtype.itemsize + gt2d.dtype.itemsize
                      + mask2d.dtype.itemsize)
    n_elems = rows * _LANE
    step_bytes = tm * _LANE * bytes_per_elem
    cost = pl.CostEstimate(
        flops=6 * n_elems,
        transcendentals=2 * n_elems,
        bytes_accessed=n_elems * bytes_per_elem + 2 * n_par * acc_rows * _LANE * 4,
    )
    # Explicit scoped-VMEM budget: double-buffered input windows + chunk temporaries.
    vmem_limit = int(max(16 << 20, min(2 * step_bytes + (8 << 20), 40 << 20)))

    return pl.pallas_call(
        kernel,
        out_shape=out_shape,
        grid_spec=pltpu.PrefetchScalarGridSpec(
            num_scalar_prefetch=0,
            grid=(n_par, steps),
            in_specs=[data_spec, data_spec, data_spec],
            out_specs=(acc_spec, acc_spec),
        ),
        compiler_params=pltpu.CompilerParams(
            dimension_semantics=("parallel", "arbitrary"),
            vmem_limit_bytes=vmem_limit,
        ),
        cost_estimate=cost,
    )(pred2d, gt2d, mask2d)


@functools.partial(jax.jit, static_argnames=("w",))
def depth_loss(depth_pred, depth_gt, mask, far, it, w: float = 1.0):
    """JAX/Pallas equivalent of DepthLoss(fn_type='l1_log', anneal=None).forward."""
    del far, it  # far unused for l1_log; anneal=None => it unused.
    # TODO(synk): annealed weight schedule (get_annealer) and the other fn_type
    # branches (l2 / l2_relative / l2_normalized / l1 / huber) are not implemented.

    # Pass pred/gt in their native float dtype (f32 or bf16); upcast happens in-kernel.
    pred_flat = depth_pred.reshape(-1)
    gt_flat = depth_gt.reshape(-1)
    if pred_flat.dtype not in (jnp.float32, jnp.bfloat16):
        pred_flat = pred_flat.astype(jnp.float32)
    if gt_flat.dtype not in (jnp.float32, jnp.bfloat16):
        gt_flat = gt_flat.astype(jnp.float32)

    # Mask: bool passthrough (no HBM conversion pass) when supported; otherwise 1B int8.
    mask_flat = mask.reshape(-1)
    if mask_flat.dtype == jnp.bool_:
        if not _BOOL_OK:
            mask_flat = mask_flat.astype(jnp.int8)
    elif mask_flat.dtype not in (jnp.int8, jnp.uint8):
        mask_flat = (mask_flat != 0).astype(jnp.int8)

    n = pred_flat.shape[0]
    rows_raw = pl.cdiv(n, _LANE)
    if rows_raw <= _TARGET_TM:
        # Small single-block path: align rows to 32 so the vreg-shaped accumulator
        # reshape and every dtype's native sublane tiling are satisfied (tiny pad).
        rows = _round_up(rows_raw, _ROW_ALIGN)
    else:
        # Large path: no row pad; the partial tail block is masked in-kernel.
        rows = rows_raw
    total = rows * _LANE
    if total != n:
        pad = total - n
        pred_flat = jnp.pad(pred_flat, (0, pad))
        gt_flat = jnp.pad(gt_flat, (0, pad))
        mask_flat = jnp.pad(mask_flat, (0, pad))    # mask pads to 0/False => excluded

    pred2d = pred_flat.reshape(rows, _LANE)
    gt2d = gt_flat.reshape(rows, _LANE)
    mask2d = mask_flat.reshape(rows, _LANE)

    s, c = _masked_l1_log_sums(pred2d, gt2d, mask2d)
    loss = jnp.sum(s) / jnp.maximum(jnp.sum(c), 1.0)       # masked mean
    return {"lidar_loss.depth": jnp.float32(w) * loss}


def _reference(depth_pred, depth_gt, mask, w=1.0):
    p = depth_pred.astype(jnp.float32)
    g = depth_gt.astype(jnp.float32)
    m = mask.astype(jnp.float32)
    d = jnp.abs(jnp.log1p(p) - jnp.log1p(g)) * m
    return w * (jnp.sum(d) / jnp.maximum(jnp.sum(m), 1.0))


if __name__ == "__main__":
    root = jax.random.PRNGKey(0)

    def check(shape, w, key, dtype=jnp.float32, rtol=1e-4):
        k1, k2, k3 = jax.random.split(key, 3)
        depth_pred = jax.random.uniform(k1, shape, dtype, 0.1, 50.0)
        depth_gt = jax.random.uniform(k2, shape, dtype, 0.1, 50.0)
        mask = jax.random.bernoulli(k3, 0.7, shape)     # bool mask (module signature)
        far = 80.0
        it = 0
        out = depth_loss(depth_pred, depth_gt, mask, far, it, w=w)
        val = jax.block_until_ready(out["lidar_loss.depth"])
        ref = _reference(depth_pred, depth_gt, mask, w=w)
        assert jnp.allclose(val, ref, rtol=rtol, atol=1e-6), (shape, dtype, val, ref)

    keys = jax.random.split(root, 4)
    # Small per-pixel depth map (module's typical call signature).
    check((2, 16, 16), 1.0, keys[0])
    # Ragged (non-lane-multiple) fallback path.
    check((2, 15, 17), 1.0, keys[1])
    # Native-bf16 read path (in-kernel upcast).
    check((2, 16, 16), 1.0, keys[2], dtype=jnp.bfloat16)
    # Multi-block path with a partial tail block (and dual-TC split on v7x).
    check((1, 8320, 128), 0.5, keys[3], rtol=5e-4)

    print("KERNEL_OK")
</pallas_src>

<mosaic_0001>
module attributes {stable_mosaic.version = 11 : i64} {
  func.func @probe(%arg0: memref<8x128xi32, #tpu.memory_space<vmem>>, %arg1: memref<8x128xf32, #tpu.memory_space<vmem>>) attributes {dimension_semantics = [], scalar_prefetch = 0 : i64, scratch_operands = 0 : i64, tpu.core_type = #tpu.core_type<tc>} {
    %c0 = arith.constant 0 : index
    %c0_0 = arith.constant 0 : index
    %0 = vector.load %arg0[%c0, %c0_0] : memref<8x128xi32, #tpu.memory_space<vmem>>, vector<8x128xi32>
    %cst = arith.constant dense<0> : vector<8x128xi32>
    %1 = arith.cmpi ne, %0, %cst : vector<8x128xi32>
    %2 = arith.extui %1 : vector<8x128xi1> to vector<8x128xi32>
    %3 = arith.sitofp %2 : vector<8x128xi32> to vector<8x128xf32>
    %c0_1 = arith.constant 0 : index
    %c0_2 = arith.constant 0 : index
    %4 = vector.load %arg1[%c0_1, %c0_2] : memref<8x128xf32, #tpu.memory_space<vmem>>, vector<8x128xf32>
    tpu.vector_store %arg1[%c0_1, %c0_2], %3 {strides = array<i32>} : memref<8x128xf32, #tpu.memory_space<vmem>>, vector<8x128xf32>,
    return
  }
}

module attributes {stable_mosaic.version = 11 : i64} {
  func.func @kernel(%arg0: i32, %arg1: i32, %arg2: memref<32x128xf32, #tpu.memory_space<vmem>>, %arg3: memref<32x128xf32, #tpu.memory_space<vmem>>, %arg4: memref<32x128xi8, #tpu.memory_space<vmem>>, %arg5: memref<1x32x128xf32, #tpu.memory_space<vmem>>, %arg6: memref<1x32x128xf32, #tpu.memory_space<vmem>>) attributes {dimension_semantics = [#tpu.dimension_semantics<parallel>, #tpu.dimension_semantics<arbitrary>], iteration_bounds = array<i64: 1, 1>, scalar_prefetch = 0 : i64, scratch_operands = 0 : i64, tpu.core_type = #tpu.core_type<tc>, window_params = [{transform_indices = @transform_0, window_bounds = array<i64: 32, 128>}, {transform_indices = @transform_1, window_bounds = array<i64: 32, 128>}, {transform_indices = @transform_2, window_bounds = array<i64: 32, 128>}, {transform_indices = @transform_3, window_bounds = array<i64: 1, 32, 128>}, {transform_indices = @transform_4, window_bounds = array<i64: 1, 32, 128>}]} {
    %c0_i32 = arith.constant 0 : i32
    %0 = arith.cmpi eq, %arg1, %c0_i32 : i32
    %1 = arith.extui %0 : i1 to i32
    %c0_i32_0 = arith.constant 0 : i32
    %2 = arith.cmpi ne, %1, %c0_i32_0 : i32
    scf.if %2 {
      %cst_18 = arith.constant 0.000000e+00 : f32
      %37 = vector.broadcast %cst_18 : f32 to vector<32x128xf32>
      %c0_19 = arith.constant 0 : index
      %c0_20 = arith.constant 0 : index
      %c0_21 = arith.constant 0 : index
      %38 = vector.load %arg5[%c0_19, %c0_20, %c0_21] : memref<1x32x128xf32, #tpu.memory_space<vmem>>, vector<1x32x128xf32>
      %39 = vector.shape_cast %38 : vector<1x32x128xf32> to vector<32x128xf32>
      %40 = vector.shape_cast %37 : vector<32x128xf32> to vector<1x32x128xf32>
      tpu.vector_store %arg5[%c0_19, %c0_20, %c0_21], %40 {strides = array<i32>} : memref<1x32x128xf32, #tpu.memory_space<vmem>>, vector<1x32x128xf32>,
      %cst_22 = arith.constant 0.000000e+00 : f32
      %41 = vector.broadcast %cst_22 : f32 to vector<32x128xf32>
      %c0_23 = arith.constant 0 : index
      %c0_24 = arith.constant 0 : index
      %c0_25 = arith.constant 0 : index
      %42 = vector.load %arg6[%c0_23, %c0_24, %c0_25] : memref<1x32x128xf32, #tpu.memory_space<vmem>>, vector<1x32x128xf32>
      %43 = vector.shape_cast %42 : vector<1x32x128xf32> to vector<32x128xf32>
      %44 = vector.shape_cast %41 : vector<32x128xf32> to vector<1x32x128xf32>
      tpu.vector_store %arg6[%c0_23, %c0_24, %c0_25], %44 {strides = array<i32>} : memref<1x32x128xf32, #tpu.memory_space<vmem>>, vector<1x32x128xf32>,
    } else {
    }
    %c0_i32_1 = arith.constant 0 : i32
    %c32_i32 = arith.constant 32 : i32
    %3 = arith.muli %c0_i32_1, %c32_i32 : i32
    %4 = tpu.assume_multiple %3, 32 : i32
    %5 = arith.index_cast %4 : i32 to index
    %c0 = arith.constant 0 : index
    %6 = vector.load %arg2[%5, %c0] : memref<32x128xf32, #tpu.memory_space<vmem>>, vector<32x128xf32>
    %7 = arith.index_cast %4 : i32 to index
    %c0_2 = arith.constant 0 : index
    %8 = vector.load %arg3[%7, %c0_2] : memref<32x128xf32, #tpu.memory_space<vmem>>, vector<32x128xf32>
    %9 = arith.index_cast %4 : i32 to index
    %c0_3 = arith.constant 0 : index
    %10 = vector.load %arg4[%9, %c0_3] : memref<32x128xi8, #tpu.memory_space<vmem>>, vector<32x128xi8>
    %c0_i8 = arith.constant 0 : i8
    %11 = vector.broadcast %c0_i8 : i8 to vector<32x128xi8>
    %12 = arith.cmpi ne, %10, %11 : vector<32x128xi8>
    %13 = math.log1p %6 : vector<32x128xf32>
    %14 = math.log1p %8 : vector<32x128xf32>
    %15 = arith.subf %13, %14 : vector<32x128xf32>
    %16 = math.absf %15 : vector<32x128xf32>
    %cst = arith.constant 0.000000e+00 : f32
    %17 = vector.broadcast %cst : f32 to vector<32x128xf32>
    %18 = arith.select %12, %16, %17 : vector<32x128xi1>, vector<32x128xf32>
    %19 = arith.extui %12 : vector<32x128xi1> to vector<32x128xi32>
    %20 = arith.sitofp %19 : vector<32x128xi32> to vector<32x128xf32>
    %c0_4 = arith.constant 0 : index
    %c0_5 = arith.constant 0 : index
    %c0_6 = arith.constant 0 : index
    %21 = vector.load %arg5[%c0_4, %c0_5, %c0_6] : memref<1x32x128xf32, #tpu.memory_space<vmem>>, vector<1x32x128xf32>
    %22 = vector.shape_cast %21 : vector<1x32x128xf32> to vector<32x128xf32>
    %23 = vector.shape_cast %18 : vector<32x128xf32> to vector<1x32x128xf32>
    %cst_7 = arith.constant dense<0.000000e+00> : vector<32x128xf32>
    %24 = vector.multi_reduction <add>, %23, %cst_7 [0] : vector<1x32x128xf32> to vector<32x128xf32>
    %25 = arith.addf %22, %24 : vector<32x128xf32>
    %c0_8 = arith.constant 0 : index
    %c0_9 = arith.constant 0 : index
    %c0_10 = arith.constant 0 : index
    %26 = vector.load %arg5[%c0_8, %c0_9, %c0_10] : memref<1x32x128xf32, #tpu.memory_space<vmem>>, vector<1x32x128xf32>
    %27 = vector.shape_cast %26 : vector<1x32x128xf32> to vector<32x128xf32>
    %28 = vector.shape_cast %25 : vector<32x128xf32> to vector<1x32x128xf32>
    tpu.vector_store %arg5[%c0_8, %c0_9, %c0_10], %28 {strides = array<i32>} : memref<1x32x128xf32, #tpu.memory_space<vmem>>, vector<1x32x128xf32>,
    %c0_11 = arith.constant 0 : index
    %c0_12 = arith.constant 0 : index
    %c0_13 = arith.constant 0 : index
    %29 = vector.load %arg6[%c0_11, %c0_12, %c0_13] : memref<1x32x128xf32, #tpu.memory_space<vmem>>, vector<1x32x128xf32>
    %30 = vector.shape_cast %29 : vector<1x32x128xf32> to vector<32x128xf32>
    %31 = vector.shape_cast %20 : vector<32x128xf32> to vector<1x32x128xf32>
    %cst_14 = arith.constant dense<0.000000e+00> : vector<32x128xf32>
    %32 = vector.multi_reduction <add>, %31, %cst_14 [0] : vector<1x32x128xf32> to vector<32x128xf32>
    %33 = arith.addf %30, %32 : vector<32x128xf32>
    %c0_15 = arith.constant 0 : index
    %c0_16 = arith.constant 0 : index
    %c0_17 = arith.constant 0 : index
    %34 = vector.load %arg6[%c0_15, %c0_16, %c0_17] : memref<1x32x128xf32, #tpu.memory_space<vmem>>, vector<1x32x128xf32>
    %35 = vector.shape_cast %34 : vector<1x32x128xf32> to vector<32x128xf32>
    %36 = vector.shape_cast %33 : vector<32x128xf32> to vector<1x32x128xf32>
    tpu.vector_store %arg6[%c0_15, %c0_16, %c0_17], %36 {strides = array<i32>} : memref<1x32x128xf32, #tpu.memory_space<vmem>>, vector<1x32x128xf32>,
    %c1_i32 = arith.constant 1 : i32
    return
  }
  func.func @transform_0(%arg0: i32, %arg1: i32) -> (i32, i32) {
    %c1_i32 = arith.constant 1 : i32
    %0 = arith.muli %arg0, %c1_i32 : i32
    %1 = arith.addi %0, %arg1 : i32
    %c0_i32 = arith.constant 0 : i32
    %c0_i32_0 = arith.constant 0 : i32
    return %1, %c0_i32 : i32, i32
  }
  func.func @transform_1(%arg0: i32, %arg1: i32) -> (i32, i32) {
    %c1_i32 = arith.constant 1 : i32
    %0 = arith.muli %arg0, %c1_i32 : i32
    %1 = arith.addi %0, %arg1 : i32
    %c0_i32 = arith.constant 0 : i32
    %c0_i32_0 = arith.constant 0 : i32
    return %1, %c0_i32 : i32, i32
  }
  func.func @transform_2(%arg0: i32, %arg1: i32) -> (i32, i32) {
    %c1_i32 = arith.constant 1 : i32
    %0 = arith.muli %arg0, %c1_i32 : i32
    %1 = arith.addi %0, %arg1 : i32
    %c0_i32 = arith.constant 0 : i32
    %c0_i32_0 = arith.constant 0 : i32
    return %1, %c0_i32 : i32, i32
  }
  func.func @transform_3(%arg0: i32, %arg1: i32) -> (i32, i32, i32) {
    %c0_i32 = arith.constant 0 : i32
    %c0_i32_0 = arith.constant 0 : i32
    %c0_i32_1 = arith.constant 0 : i32
    return %arg0, %c0_i32, %c0_i32_0 : i32, i32, i32
  }
  func.func @transform_4(%arg0: i32, %arg1: i32) -> (i32, i32, i32) {
    %c0_i32 = arith.constant 0 : i32
    %c0_i32_0 = arith.constant 0 : i32
    %c0_i32_1 = arith.constant 0 : i32
    return %arg0, %c0_i32, %c0_i32_0 : i32, i32, i32
  }
}

</mosaic_0001>

<llo_original>
// kernel: tpu_custom_call.1
$region0: #{tpu_custom_call.1}
  #allocation0 [shape = 'u32[]', space=smem, size = 0x4, offset = 0x4, fixed_abs, tag = 'smem constant byte address 0x4 - core index']
  #allocation1 [shape = 'u32[72,128]{1,0:T(1,128)}', space=vmem, size = 0x9000, scoped, tag = 'internal scratch']
  %s0 = inlined_call_operand.vmem [shape: s32[8,128], index: 0, kind: input, shape index: {}]
  %s1 = inlined_call_operand.hbm [shape: f32[8,128], index: 1, kind: output, shape index: {}]
  %s2 = sld [smem:[#allocation0]]
  $region14: #{tpu_custom_call.1} parent=0
    _
  %s4 = ssub.s32 1, %s2
  %s5 = scalar_select 0, %s4, %s2
  $region1: #{tpu_custom_call.1} parent=0
    #allocation2 [shape = 'u8[4096]{0}', space=vmem, size = 0x1000, scoped, tag = 'output window, operand 0, single buffered']
    #allocation3 [shape = 's32[1]{0}', space=sflag, size = 0x4, scoped, tag = 'scoped memory for tpu_custom_call.1']
    %6 = vsyncpa [#allocation3], 0
    // Predicated region
    $region2: #{tpu_custom_call.1} parent=1 // pred_check
      _
    $region3: #{tpu_custom_call.1} parent=1 // pred_check_branch
      %8 = sbr.rel (0) target = $region5
    $region4: #{tpu_custom_call.1} parent=1 // pred_region
      _
    $region5: #{tpu_custom_call.1} parent=1 // pred_fallthru
      _
    %v9 = vld [vmem:[%s0] sm:$0xff]
    %vm10 = vcmp.ne.s32.totalorder %v9, 0
    %v11 = vsel %vm10, 1, 0
    %v12 = vcvt.s32.f32 %v11
    %13 = vst [vmem:[#allocation2] sm:$0xff] %v12
    // Predicated region
    $region6: #{tpu_custom_call.1} parent=1 // pred_check
      _
    $region7: #{tpu_custom_call.1} parent=1 // pred_check_branch
      %15 = sbr.rel (0) target = $region9
    $region8: #{tpu_custom_call.1} parent=1 // pred_region
      %17 = vsyncadd [#allocation3], 0
      %s19 = sshll.u32 [#allocation2], 4
      %s20 = int_to_ptr.vmem [resolvable:$true] %s19
      %s21 = sshll.u32 %s1, 4
      %s22 = int_to_ptr.hbm [resolvable:$true] %s21
      %24 = dma.vmem_to_hbm [thread:$0]  %s20, 128, %s22, [#allocation3]
    $region9: #{tpu_custom_call.1} parent=1 // pred_fallthru
      _
    // Predicated region
    $region10: #{tpu_custom_call.1} parent=1 // pred_check
      _
    $region11: #{tpu_custom_call.1} parent=1 // pred_check_branch
      %26 = sbr.rel (0) target = $region13
    $region12: #{tpu_custom_call.1} parent=1 // pred_region
      %28 = dma.done [#allocation3], 128
    $region13: #{tpu_custom_call.1} parent=1 // pred_fallthru
      _
    %29 = vsyncpa [#allocation3], 1

// kernel: depth_loss.1
$region0: #{depth_loss.1}
  #allocation0 [shape = 'u32[]', space=smem, size = 0x4, offset = 0x4, fixed_abs, tag = 'smem constant byte address 0x4 - core index']
  #allocation1 [shape = 'u32[72,128]{1,0:T(1,128)}', space=vmem, size = 0x9000, scoped, tag = 'internal scratch']
  %s0 = inlined_call_operand.vmem [shape: f32[32,128], index: 0, kind: input, shape index: {}]
  %s1 = inlined_call_operand.vmem [shape: f32[32,128], index: 1, kind: input, shape index: {}]
  %s2 = inlined_call_operand.vmem [shape: s8[32,128], index: 2, kind: input, shape index: {}]
  %s3 = inlined_call_operand.vmem [shape: f32[1,32,128], index: 3, kind: output, shape index: {0}]
  %s4 = inlined_call_operand.vmem [shape: f32[1,32,128], index: 4, kind: output, shape index: {1}]
  %5 = xla_tuple %s3, %s4
  %s6 = sld [smem:[#allocation0]]
  $region34: #{depth_loss.1} parent=0
    _
  %s8 = ssub.s32 1, %s6
  %s9 = scalar_select 0, %s8, %s6
  // Predicated region
  $region2: #{depth_loss.1} parent=0 // pred_check
    _
  $region3: #{depth_loss.1} parent=0 // pred_check_branch
    %11 = sbr.rel (0) target = $region5
  $region4: #{depth_loss.1} parent=0 // pred_region
    %s12 = sadd.s32 0, 0
    %s13 = smul.u32 4, %s12
    %p14 = scmp.lt.s32.totalorder %s13, 3
    %s15 = scalar_select %p14, %s13, 3
    %s16 = smul.addr %s15, 8
    %s17 = scalar_lea.vmem %s0, %s16
    %s18 = sadd.s32 0, 0
    %s19 = smul.u32 4, %s18
  $region5: #{depth_loss.1} parent=0 // pred_fallthru
    _
  // Predicated region
  $region6: #{depth_loss.1} parent=0 // pred_check
    _
  $region7: #{depth_loss.1} parent=0 // pred_check_branch
    %21 = sbr.rel (0) target = $region9
  $region8: #{depth_loss.1} parent=0 // pred_region
    %s22 = sadd.s32 0, 0
    %s23 = smul.u32 4, %s22
    %p24 = scmp.lt.s32.totalorder %s23, 3
    %s25 = scalar_select %p24, %s23, 3
    %s26 = smul.addr %s25, 8
    %s27 = scalar_lea.vmem %s1, %s26
    %s28 = sadd.s32 0, 0
    %s29 = smul.u32 4, %s28
  $region9: #{depth_loss.1} parent=0 // pred_fallthru
    _
  // Predicated region
  $region10: #{depth_loss.1} parent=0 // pred_check
    _
  $region11: #{depth_loss.1} parent=0 // pred_check_branch
    %31 = sbr.rel (0) target = $region13
  $region12: #{depth_loss.1} parent=0 // pred_region
    %s32 = sadd.s32 0, 0
    %p33 = scmp.lt.s32.totalorder %s32, 0
    %s34 = scalar_select %p33, %s32, 0
    %s35 = smul.addr %s34, 8
    %s36 = scalar_lea.vmem %s2, %s35
    %s37 = sadd.s32 0, 0
  $region13: #{depth_loss.1} parent=0 // pred_fallthru
    _
  %s38 = sadd.s32 0, 0
  %s39 = smul.u32 4, %s38
  %p40 = scmp.lt.s32.totalorder %s39, 3
  %s41 = scalar_select %p40, %s39, 3
  %s42 = smul.addr %s41, 8
  %s43 = scalar_lea.vmem %s0, %s42
  %s44 = sadd.s32 0, 0
  %s45 = smul.u32 4, %s44
  %p46 = scmp.lt.s32.totalorder %s45, 3
  %s47 = scalar_select %p46, %s45, 3
  %s48 = smul.addr %s47, 8
  %s49 = scalar_lea.vmem %s1, %s48
  %s50 = sadd.s32 0, 0
  %p51 = scmp.lt.s32.totalorder %s50, 0
  %s52 = scalar_select %p51, %s50, 0
  %s53 = smul.addr %s52, 8
  %s54 = scalar_lea.vmem %s2, %s53
  %s55 = sadd.s32 0, 0
  %s56 = smul.u32 4, %s55
  %p57 = scmp.lt.s32.totalorder %s56, 3
  %s58 = scalar_select %p57, %s56, 3
  %s59 = smul.addr %s58, 8
  %s60 = scalar_lea.vmem %s0, %s59
  %s61 = sadd.s32 0, 0
  %s62 = smul.u32 4, %s61
  %s63 = sadd.s32 0, 0
  %s64 = smul.u32 4, %s63
  %p65 = scmp.lt.s32.totalorder %s64, 3
  %s66 = scalar_select %p65, %s64, 3
  %s67 = smul.addr %s66, 8
  %s68 = scalar_lea.vmem %s1, %s67
  %s69 = sadd.s32 0, 0
  %s70 = smul.u32 4, %s69
  %s71 = sadd.s32 0, 0
  %p72 = scmp.lt.s32.totalorder %s71, 0
  %s73 = scalar_select %p72, %s71, 0
  %s74 = smul.addr %s73, 8
  %s75 = scalar_lea.vmem %s2, %s74
  %s76 = sadd.s32 0, 0
  %p79 = scmp.eq.s32.totalorder 0, 0
  // Predicated region
  $region14: #{depth_loss.1} parent=0 // pred_check
    %p80 = pneg %p79
  $region15: #{depth_loss.1} parent=0 // pred_check_branch
    %82 = sbr.rel (%p80) target = $region17
  $region16: #{depth_loss.1} parent=0 // pred_region
    %83 = vst [vmem:[%s3] sm:$0xff] 0.0
    %84 = vst [vmem:[%s3 + $0x8] sm:$0xff] 0.0
    %85 = vst [vmem:[%s3 + $0x10] sm:$0xff] 0.0
    %86 = vst [vmem:[%s3 + $0x18] sm:$0xff] 0.0
    %87 = vst [vmem:[%s4] sm:$0xff] 0.0
    %88 = vst [vmem:[%s4 + $0x8] sm:$0xff] 0.0
    %89 = vst [vmem:[%s4 + $0x10] sm:$0xff] 0.0
    %90 = vst [vmem:[%s4 + $0x18] sm:$0xff] 0.0
  $region17: #{depth_loss.1} parent=0 // pred_fallthru
    _
  %v91 = vld [vmem:[%s60] sm:$0xff]
  %v92 = vld [vmem:[%s60 + $0x8] sm:$0xff]
  %v93 = vld [vmem:[%s60 + $0x10] sm:$0xff]
  %v94 = vld [vmem:[%s60 + $0x18] sm:$0xff]
  %v95 = vld [vmem:[%s68] sm:$0xff]
  %v96 = vld [vmem:[%s68 + $0x8] sm:$0xff]
  %v97 = vld [vmem:[%s68 + $0x10] sm:$0xff]
  %v98 = vld [vmem:[%s68 + $0x18] sm:$0xff]
  %v99 = vld [vmem:[%s75] sm:$0xff]
  %vm100 = vnez %v99
  %v101 = vadd.f32 %v91, 1.0
  %v102 = vlog2.pop %v101
  %v103 = vmul.f32 %v102, 0.6931472
  %v104 = vmul.f32 -0.5, %v91
  %v105 = vadd.f32 %v104, 1.0
  %v106 = vmul.f32 %v105, %v91
  %v107 = vand.u32 2147483647, %v91
  %vm108 = vcmp.lt.f32.partialorder %v107, 0.0004427343
  %v109 = vsel %vm108, %v106, %v103
  %v110 = vadd.f32 %v92, 1.0
  %v111 = vlog2.pop %v110
  %v112 = vmul.f32 %v111, 0.6931472
  %v113 = vmul.f32 -0.5, %v92
  %v114 = vadd.f32 %v113, 1.0
  %v115 = vmul.f32 %v114, %v92
  %v116 = vand.u32 2147483647, %v92
  %vm117 = vcmp.lt.f32.partialorder %v116, 0.0004427343
  %v118 = vsel %vm117, %v115, %v112
  %v119 = vadd.f32 %v93, 1.0
  %v120 = vlog2.pop %v119
  %v121 = vmul.f32 %v120, 0.6931472
  %v122 = vmul.f32 -0.5, %v93
  %v123 = vadd.f32 %v122, 1.0
  %v124 = vmul.f32 %v123, %v93
  %v125 = vand.u32 2147483647, %v93
  %vm126 = vcmp.lt.f32.partialorder %v125, 0.0004427343
  %v127 = vsel %vm126, %v124, %v121
  %v128 = vadd.f32 %v94, 1.0
  %v129 = vlog2.pop %v128
  %v130 = vmul.f32 %v129, 0.6931472
  %v131 = vmul.f32 -0.5, %v94
  %v132 = vadd.f32 %v131, 1.0
  %v133 = vmul.f32 %v132, %v94
  %v134 = vand.u32 2147483647, %v94
  %vm135 = vcmp.lt.f32.partialorder %v134, 0.0004427343
  %v136 = vsel %vm135, %v133, %v130
  %v137 = vadd.f32 %v95, 1.0
  %v138 = vlog2.pop %v137
  %v139 = vmul.f32 %v138, 0.6931472
  %v140 = vmul.f32 -0.5, %v95
  %v141 = vadd.f32 %v140, 1.0
  %v142 = vmul.f32 %v141, %v95
  %v143 = vand.u32 2147483647, %v95
  %vm144 = vcmp.lt.f32.partialorder %v143, 0.0004427343
  %v145 = vsel %vm144, %v142, %v139
  %v146 = vadd.f32 %v96, 1.0
  %v147 = vlog2.pop %v146
  %v148 = vmul.f32 %v147, 0.6931472
  %v149 = vmul.f32 -0.5, %v96
  %v150 = vadd.f32 %v149, 1.0
  %v151 = vmul.f32 %v150, %v96
  %v152 = vand.u32 2147483647, %v96
  %vm153 = vcmp.lt.f32.partialorder %v152, 0.0004427343
  %v154 = vsel %vm153, %v151, %v148
  %v155 = vadd.f32 %v97, 1.0
  %v156 = vlog2.pop %v155
  %v157 = vmul.f32 %v156, 0.6931472
  %v158 = vmul.f32 -0.5, %v97
  %v159 = vadd.f32 %v158, 1.0
  %v160 = vmul.f32 %v159, %v97
  %v161 = vand.u32 2147483647, %v97
  %vm162 = vcmp.lt.f32.partialorder %v161, 0.0004427343
  %v163 = vsel %vm162, %v160, %v157
  %v164 = vadd.f32 %v98, 1.0
  %v165 = vlog2.pop %v164
  %v166 = vmul.f32 %v165, 0.6931472
  %v167 = vmul.f32 -0.5, %v98
  %v168 = vadd.f32 %v167, 1.0
  %v169 = vmul.f32 %v168, %v98
  %v170 = vand.u32 2147483647, %v98
  %vm171 = vcmp.lt.f32.partialorder %v170, 0.0004427343
  %v172 = vsel %vm171, %v169, %v166
  %v173 = vsub.f32 %v109, %v145
  %v174 = vsub.f32 %v118, %v154
  %v175 = vsub.f32 %v127, %v163
  %v176 = vsub.f32 %v136, %v172
  %v177 = vand.u32 2147483647, %v173
  %v178 = vand.u32 2147483647, %v174
  %v179 = vand.u32 2147483647, %v175
  %v180 = vand.u32 2147483647, %v176
  %v181 = vsel %vm100, 16843009, 0
  %v182 = vunpack.c.0.s8 %v181
  %v183 = vunpack.c.1.s8 %v181
  %v184 = vunpack.c.2.s8 %v181
  %v185 = vunpack.c.3.s8 %v181
  %v186 = vpack.c.b16 %v182, %v182
  %v187 = vpack.c.b8 %v186, %v186
  %v188 = vpack.c.b16 %v183, %v183
  %v189 = vpack.c.b8 %v188, %v188
  %v190 = vpack.c.b16 %v184, %v184
  %v191 = vpack.c.b8 %v190, %v190
  %v192 = vpack.c.b16 %v185, %v185
  %v193 = vpack.c.b8 %v192, %v192
  %vm194 = vnez %v187
  %vm195 = vnez %v189
  %vm196 = vnez %v191
  %vm197 = vnez %v193
  %v198 = vsel %vm194, 16843009, 0
  %v199 = vsel %vm195, 16843009, 0
  %v200 = vsel %vm196, 16843009, 0
  %v201 = vsel %vm197, 16843009, 0
  %v202 = vunpack.c.0.s8 %v198
  %v203 = vunpack.c.0.s8 %v199
  %v204 = vunpack.c.0.s8 %v200
  %v205 = vunpack.c.0.s8 %v201
  %vm206 = vcmp.ne.s32.totalorder %v202, 0
  %vm207 = vcmp.ne.s32.totalorder %v203, 0
  %vm208 = vcmp.ne.s32.totalorder %v204, 0
  %vm209 = vcmp.ne.s32.totalorder %v205, 0
  %v210 = vsel %vm206, %v177, 0.0
  %v211 = vsel %vm207, %v178, 0.0
  %v212 = vsel %vm208, %v179, 0.0
  %v213 = vsel %vm209, %v180, 0.0
  %v214 = vsel %vm206, 1, 0
  %v215 = vsel %vm207, 1, 0
  %v216 = vsel %vm208, 1, 0
  %v217 = vsel %vm209, 1, 0
  %v218 = vcvt.s32.f32 %v214
  %v219 = vcvt.s32.f32 %v215
  %v220 = vcvt.s32.f32 %v216
  %v221 = vcvt.s32.f32 %v217
  %v222 = vld [vmem:[%s3] sm:$0xff]
  %v223 = vld [vmem:[%s3 + $0x8] sm:$0xff]
  %v224 = vld [vmem:[%s3 + $0x10] sm:$0xff]
  %v225 = vld [vmem:[%s3 + $0x18] sm:$0xff]
  %v226 = vadd.f32 %v210, 0.0
  %v227 = vadd.f32 %v211, 0.0
  %v228 = vadd.f32 %v212, 0.0
  %v229 = vadd.f32 %v213, 0.0
  %v230 = vadd.f32 %v222, %v226
  %v231 = vadd.f32 %v223, %v227
  %v232 = vadd.f32 %v224, %v228
  %v233 = vadd.f32 %v225, %v229
  %234 = vst [vmem:[%s3] sm:$0xff] %v230
  %235 = vst [vmem:[%s3 + $0x8] sm:$0xff] %v231
  %236 = vst [vmem:[%s3 + $0x10] sm:$0xff] %v232
  %237 = vst [vmem:[%s3 + $0x18] sm:$0xff] %v233
  %v238 = vld [vmem:[%s4] sm:$0xff]
  %v239 = vld [vmem:[%s4 + $0x8] sm:$0xff]
  %v240 = vld [vmem:[%s4 + $0x10] sm:$0xff]
  %v241 = vld [vmem:[%s4 + $0x18] sm:$0xff]
  %v242 = vadd.f32 %v218, 0.0
  %v243 = vadd.f32 %v219, 0.0
  %v244 = vadd.f32 %v220, 0.0
  %v245 = vadd.f32 %v221, 0.0
  %v246 = vadd.f32 %v238, %v242
  %v247 = vadd.f32 %v239, %v243
  %v248 = vadd.f32 %v240, %v244
  %v249 = vadd.f32 %v241, %v245
  %250 = vst [vmem:[%s4] sm:$0xff] %v246
  %251 = vst [vmem:[%s4 + $0x8] sm:$0xff] %v247
  %252 = vst [vmem:[%s4 + $0x10] sm:$0xff] %v248
  %253 = vst [vmem:[%s4 + $0x18] sm:$0xff] %v249
  // Predicated region
  $region18: #{depth_loss.1} parent=0 // pred_check
    _
  $region19: #{depth_loss.1} parent=0 // pred_check_branch
    %255 = sbr.rel (0) target = $region21
  $region20: #{depth_loss.1} parent=0 // pred_region
    _
  $region21: #{depth_loss.1} parent=0 // pred_fallthru
    _
  // Predicated region
  $region22: #{depth_loss.1} parent=0 // pred_check
    _
  $region23: #{depth_loss.1} parent=0 // pred_check_branch
    %257 = sbr.rel (0) target = $region25
  $region24: #{depth_loss.1} parent=0 // pred_region
    _
  $region25: #{depth_loss.1} parent=0 // pred_fallthru
    _
  // Predicated region
  $region26: #{depth_loss.1} parent=0 // pred_check
    _
  $region27: #{depth_loss.1} parent=0 // pred_check_branch
    %259 = sbr.rel (0) target = $region29
  $region28: #{depth_loss.1} parent=0 // pred_region
    _
  $region29: #{depth_loss.1} parent=0 // pred_fallthru
    _
  // Predicated region
  $region30: #{depth_loss.1} parent=0 // pred_check
    _
  $region31: #{depth_loss.1} parent=0 // pred_check_branch
    %261 = sbr.rel (0) target = $region33
  $region32: #{depth_loss.1} parent=0 // pred_region
    _
  $region33: #{depth_loss.1} parent=0 // pred_fallthru
    _

</llo_original>
